<compile_context>
chip_gen: v7x
topology: tpu7x:2x2x1
jax: 0.10.0
libtpu: 0.0.40
codegen_flags: <defaults>
</compile_context>

<pallas_src>
import jax
import jax.numpy as jnp
from jax.experimental import pallas as pl
from jax.experimental.pallas import tpu as pltpu


def _round_up(x, m):
    return ((x + m - 1) // m) * m


def critic_kernel(x_ref, w1_ref, b1_ref, w2_ref, b2_ref, w3_ref, b3_ref, o_ref):
    # bf16 MXU operands, f32 accumulation.
    x = x_ref[...].astype(jnp.bfloat16)                       # (TM, S)

    h1 = jnp.dot(x, w1_ref[...], preferred_element_type=jnp.float32) + b1_ref[...]
    h1 = jnp.maximum(h1, 0.0)                                  # (TM, 16) f32

    h2 = jnp.dot(h1.astype(jnp.bfloat16), w2_ref[...],
                 preferred_element_type=jnp.float32) + b2_ref[...]
    h2 = jnp.maximum(h2, 0.0)                                  # (TM, 16) f32

    # Final [16 -> 1] layer on the VPU/XLU: broadcast-multiply by the single
    # weight row and lane-reduce (avoids a 1/128-lane MXU pass).
    v = jnp.sum(h2 * w3_ref[...], axis=-1)                     # (TM,) f32

    # Lane-dense (1, TM) store; the wrapper turns this back into (B, 1).
    o_ref[...] = (v[None, :] + b3_ref[...]).astype(o_ref.dtype)


def critic_forward(state, params, *, tm=4096):
    """state: [B, state_dim] float32 -> value: [B, 1] float32."""
    w1, b1, w2, b2, w3, b3 = params
    B, state_dim = state.shape

    # MXU operands in bf16 (tiny one-off casts; accumulation stays f32).
    w1 = w1.astype(jnp.bfloat16)
    w2 = w2.astype(jnp.bfloat16)

    # Batch-tile selection:
    #   * tiny batch: one sublane-aligned tile (Pallas pads the edge block),
    #   * large batch: big tiles (amortize per-step overhead) but capped so the
    #     grid has >= 2 "parallel" steps for v7x's two TensorCores.
    if B <= 1024:
        TM = _round_up(B, 8)
    else:
        TM = min(tm, _round_up(pl.cdiv(B, 2), 256))
    num_tiles = pl.cdiv(B, TM)

    # VMEM footprint @ TM=4096 (lane-padded to 128): 2 x 2 MiB state buffers +
    # ~6-8 MiB of (TM,16)->(TM,128)-padded intermediates + tiny weights/output,
    # comfortably under the 32 MiB scoped limit on v5e/v6e/v7x.
    out = pl.pallas_call(
        critic_kernel,
        out_shape=jax.ShapeDtypeStruct((num_tiles, TM), jnp.float32),
        grid=(num_tiles,),
        in_specs=[
            # State streams tile-by-tile (double-buffered by Pallas); the last
            # (edge) block may be partial -- no wrapper-side jnp.pad copy.
            pl.BlockSpec((TM, state_dim), lambda i: (i, 0)),
            # Weights / biases: constant block index -> VMEM-resident.
            pl.BlockSpec(w1.shape, lambda i: (0, 0)),
            pl.BlockSpec(b1.shape, lambda i: (0, 0)),
            pl.BlockSpec(w2.shape, lambda i: (0, 0)),
            pl.BlockSpec(b2.shape, lambda i: (0, 0)),
            pl.BlockSpec(w3.shape, lambda i: (0, 0)),
            pl.BlockSpec(b3.shape, lambda i: (0, 0)),
        ],
        out_specs=pl.BlockSpec((1, TM), lambda i: (i, 0)),
        compiler_params=pltpu.CompilerParams(
            dimension_semantics=("parallel",),
            vmem_limit_bytes=32 * 1024 * 1024,
        ),
    )(state, w1, b1, w2, b2, w3, b3)

    # (num_tiles, TM) lane-dense slab -> (B, 1) column; padded rows sliced off.
    return out.reshape(num_tiles * TM, 1)[:B]


def init_params(key, state_dim):
    """Deterministic init mimicking nn.Linear's U(-1/sqrt(fan_in), +1/sqrt(fan_in))."""
    def linear(key, fan_in, fan_out):
        kw, kb = jax.random.split(key)
        bound = 1.0 / jnp.sqrt(jnp.float32(fan_in))
        w = jax.random.uniform(kw, (fan_in, fan_out), jnp.float32, -bound, bound)
        b = jax.random.uniform(kb, (1, fan_out), jnp.float32, -bound, bound)
        return w, b

    k1, k2, k3 = jax.random.split(key, 3)
    w1, b1 = linear(k1, state_dim, 16)
    w2, b2 = linear(k2, 16, 16)
    w3_col, b3 = linear(k3, 16, 1)
    w3 = w3_col.reshape(1, 16)  # single output row, stored lane-dense
    return (w1, b1, w2, b2, w3, b3)


def critic_reference(state, params, *, mxu_dtype=jnp.float32):
    """Pure-JAX reference. mxu_dtype=bf16 mirrors the kernel's mixed precision."""
    w1, b1, w2, b2, w3, b3 = params
    h = jnp.dot(state.astype(mxu_dtype), w1.astype(mxu_dtype),
                preferred_element_type=jnp.float32) + b1
    h = jnp.maximum(h, 0.0)
    h = jnp.dot(h.astype(mxu_dtype), w2.astype(mxu_dtype),
                preferred_element_type=jnp.float32) + b2
    h = jnp.maximum(h, 0.0)
    return jnp.sum(h * w3, axis=-1, keepdims=True) + b3


def _check(v, state, params, expected_shape):
    assert v.shape == expected_shape, v.shape
    # Tight check vs. a reference with the same bf16-MXU numerics.
    v_mixed = critic_reference(state, params, mxu_dtype=jnp.bfloat16)
    assert jnp.allclose(v, v_mixed, atol=5e-3, rtol=5e-3), (
        float(jnp.max(jnp.abs(v - v_mixed))))
    # Loose check vs. the exact f32 module semantics (bf16 operand rounding).
    v_f32 = critic_reference(state, params)
    assert jnp.allclose(v, v_f32, atol=5e-2, rtol=5e-2), (
        float(jnp.max(jnp.abs(v - v_f32))))


if __name__ == "__main__":
    key = jax.random.PRNGKey(0)
    k_params, ks1, ks2, ks3 = jax.random.split(key, 4)

    state_dim = 32  # small synthetic state dimension
    params = init_params(k_params, state_dim)

    # Case 1: tiny batch -> single 8-row tile, no edge padding.
    s1 = jax.random.normal(ks1, (8, state_dim), jnp.float32)
    v1 = jax.block_until_ready(critic_forward(s1, params))
    _check(v1, s1, params, (8, 1))

    # Case 2: batch not a multiple of 8 -> single tile with a Pallas-padded
    # edge block (padded rows carry unspecified data and are sliced off).
    s2 = jax.random.normal(ks2, (300, state_dim), jnp.float32)
    v2 = jax.block_until_ready(critic_forward(s2, params))
    _check(v2, s2, params, (300, 1))

    # Case 3: multi-tile batch -> two "parallel" tiles (TM=768) with a partial
    # edge block; exercises the pipelined / dual-TensorCore path.
    s3 = jax.random.normal(ks3, (1500, state_dim), jnp.float32)
    v3 = jax.block_until_ready(critic_forward(s3, params))
    _check(v3, s3, params, (1500, 1))

    print("KERNEL_OK")
</pallas_src>

<mosaic_0001>
module attributes {stable_mosaic.version = 11 : i64} {
  func.func @critic_kernel(%arg0: i32, %arg1: memref<8x32xf32, #tpu.memory_space<vmem>>, %arg2: memref<32x16xbf16, #tpu.memory_space<vmem>>, %arg3: memref<1x16xf32, #tpu.memory_space<vmem>>, %arg4: memref<16x16xbf16, #tpu.memory_space<vmem>>, %arg5: memref<1x16xf32, #tpu.memory_space<vmem>>, %arg6: memref<1x16xf32, #tpu.memory_space<vmem>>, %arg7: memref<1x1xf32, #tpu.memory_space<vmem>>, %arg8: memref<1x8xf32, #tpu.memory_space<vmem>>) attributes {dimension_semantics = [#tpu.dimension_semantics<parallel>], iteration_bounds = array<i64: 1>, scalar_prefetch = 0 : i64, scratch_operands = 0 : i64, tpu.core_type = #tpu.core_type<tc>, window_params = [{transform_indices = @transform_0, window_bounds = array<i64: 8, 32>}, {pipeline_mode = #tpu.pipeline_mode<synchronous>, transform_indices = @transform_1, window_bounds = array<i64: 32, 16>}, {pipeline_mode = #tpu.pipeline_mode<synchronous>, transform_indices = @transform_2, window_bounds = array<i64: 1, 16>}, {pipeline_mode = #tpu.pipeline_mode<synchronous>, transform_indices = @transform_3, window_bounds = array<i64: 16, 16>}, {pipeline_mode = #tpu.pipeline_mode<synchronous>, transform_indices = @transform_4, window_bounds = array<i64: 1, 16>}, {pipeline_mode = #tpu.pipeline_mode<synchronous>, transform_indices = @transform_5, window_bounds = array<i64: 1, 16>}, {pipeline_mode = #tpu.pipeline_mode<synchronous>, transform_indices = @transform_6, window_bounds = array<i64: 1, 1>}, {transform_indices = @transform_7, window_bounds = array<i64: 1, 8>}]} {
    %c0 = arith.constant 0 : index
    %c0_0 = arith.constant 0 : index
    %0 = vector.load %arg1[%c0, %c0_0] : memref<8x32xf32, #tpu.memory_space<vmem>>, vector<8x32xf32>
    %1 = arith.truncf %0 : vector<8x32xf32> to vector<8x32xbf16>
    %c0_1 = arith.constant 0 : index
    %c0_2 = arith.constant 0 : index
    %2 = vector.load %arg2[%c0_1, %c0_2] : memref<32x16xbf16, #tpu.memory_space<vmem>>, vector<32x16xbf16>
    %cst = arith.constant dense<0.000000e+00> : vector<8x16xf32>
    %3 = tpu.matmul %1, %2, %cst {dimension_numbers = #tpu.dot_dimension_numbers<[1], [0], [0], [1], [0, 0, 1, 1], [], []>} : vector<8x32xbf16>, vector<32x16xbf16>, vector<8x16xf32> -> vector<8x16xf32>
    %c0_3 = arith.constant 0 : index
    %c0_4 = arith.constant 0 : index
    %4 = vector.load %arg3[%c0_3, %c0_4] : memref<1x16xf32, #tpu.memory_space<vmem>>, vector<1x16xf32>
    %5 = vector.broadcast %4 : vector<1x16xf32> to vector<8x16xf32>
    %6 = arith.addf %3, %5 : vector<8x16xf32>
    %cst_5 = arith.constant 0.000000e+00 : f32
    %7 = vector.broadcast %cst_5 : f32 to vector<8x16xf32>
    %8 = arith.maximumf %6, %7 : vector<8x16xf32>
    %9 = arith.truncf %8 : vector<8x16xf32> to vector<8x16xbf16>
    %c0_6 = arith.constant 0 : index
    %c0_7 = arith.constant 0 : index
    %10 = vector.load %arg4[%c0_6, %c0_7] : memref<16x16xbf16, #tpu.memory_space<vmem>>, vector<16x16xbf16>
    %cst_8 = arith.constant dense<0.000000e+00> : vector<8x16xf32>
    %11 = tpu.matmul %9, %10, %cst_8 {dimension_numbers = #tpu.dot_dimension_numbers<[1], [0], [0], [1], [0, 0, 1, 1], [], []>} : vector<8x16xbf16>, vector<16x16xbf16>, vector<8x16xf32> -> vector<8x16xf32>
    %c0_9 = arith.constant 0 : index
    %c0_10 = arith.constant 0 : index
    %12 = vector.load %arg5[%c0_9, %c0_10] : memref<1x16xf32, #tpu.memory_space<vmem>>, vector<1x16xf32>
    %13 = vector.broadcast %12 : vector<1x16xf32> to vector<8x16xf32>
    %14 = arith.addf %11, %13 : vector<8x16xf32>
    %cst_11 = arith.constant 0.000000e+00 : f32
    %15 = vector.broadcast %cst_11 : f32 to vector<8x16xf32>
    %16 = arith.maximumf %14, %15 : vector<8x16xf32>
    %c0_12 = arith.constant 0 : index
    %c0_13 = arith.constant 0 : index
    %17 = vector.load %arg6[%c0_12, %c0_13] : memref<1x16xf32, #tpu.memory_space<vmem>>, vector<1x16xf32>
    %18 = vector.broadcast %17 : vector<1x16xf32> to vector<8x16xf32>
    %19 = arith.mulf %16, %18 : vector<8x16xf32>
    %cst_14 = arith.constant dense<0.000000e+00> : vector<8xf32>
    %20 = vector.multi_reduction <add>, %19, %cst_14 [1] : vector<8x16xf32> to vector<8xf32>
    %21 = vector.shape_cast %20 : vector<8xf32> to vector<1x8xf32>
    %c0_15 = arith.constant 0 : index
    %c0_16 = arith.constant 0 : index
    %22 = vector.load %arg7[%c0_15, %c0_16] : memref<1x1xf32, #tpu.memory_space<vmem>>, vector<1x1xf32>
    %23 = vector.broadcast %22 : vector<1x1xf32> to vector<1x8xf32>
    %24 = arith.addf %21, %23 : vector<1x8xf32>
    %c0_17 = arith.constant 0 : index
    %c0_18 = arith.constant 0 : index
    %25 = vector.load %arg8[%c0_17, %c0_18] : memref<1x8xf32, #tpu.memory_space<vmem>>, vector<1x8xf32>
    tpu.vector_store %arg8[%c0_17, %c0_18], %24 {strides = array<i32>} : memref<1x8xf32, #tpu.memory_space<vmem>>, vector<1x8xf32>,
    return
  }
  func.func @transform_0(%arg0: i32) -> (i32, i32) {
    %c0_i32 = arith.constant 0 : i32
    %c0_i32_0 = arith.constant 0 : i32
    return %arg0, %c0_i32 : i32, i32
  }
  func.func @transform_1(%arg0: i32) -> (i32, i32) {
    %c0_i32 = arith.constant 0 : i32
    %c0_i32_0 = arith.constant 0 : i32
    %c0_i32_1 = arith.constant 0 : i32
    return %c0_i32, %c0_i32_0 : i32, i32
  }
  func.func @transform_2(%arg0: i32) -> (i32, i32) {
    %c0_i32 = arith.constant 0 : i32
    %c0_i32_0 = arith.constant 0 : i32
    %c0_i32_1 = arith.constant 0 : i32
    return %c0_i32, %c0_i32_0 : i32, i32
  }
  func.func @transform_3(%arg0: i32) -> (i32, i32) {
    %c0_i32 = arith.constant 0 : i32
    %c0_i32_0 = arith.constant 0 : i32
    %c0_i32_1 = arith.constant 0 : i32
    return %c0_i32, %c0_i32_0 : i32, i32
  }
  func.func @transform_4(%arg0: i32) -> (i32, i32) {
    %c0_i32 = arith.constant 0 : i32
    %c0_i32_0 = arith.constant 0 : i32
    %c0_i32_1 = arith.constant 0 : i32
    return %c0_i32, %c0_i32_0 : i32, i32
  }
  func.func @transform_5(%arg0: i32) -> (i32, i32) {
    %c0_i32 = arith.constant 0 : i32
    %c0_i32_0 = arith.constant 0 : i32
    %c0_i32_1 = arith.constant 0 : i32
    return %c0_i32, %c0_i32_0 : i32, i32
  }
  func.func @transform_6(%arg0: i32) -> (i32, i32) {
    %c0_i32 = arith.constant 0 : i32
    %c0_i32_0 = arith.constant 0 : i32
    %c0_i32_1 = arith.constant 0 : i32
    return %c0_i32, %c0_i32_0 : i32, i32
  }
  func.func @transform_7(%arg0: i32) -> (i32, i32) {
    %c0_i32 = arith.constant 0 : i32
    %c0_i32_0 = arith.constant 0 : i32
    return %arg0, %c0_i32 : i32, i32
  }
}

</mosaic_0001>

<llo_original>
// kernel: tpu_custom_call.1
$region0: #{tpu_custom_call.1}
  #allocation0 [shape = 'u32[]', space=smem, size = 0x4, offset = 0x4, fixed_abs, tag = 'smem constant byte address 0x4 - core index']
  #allocation1 [shape = 'u32[144,128]{1,0:T(1,128)}', space=vmem, size = 0x12000, scoped, tag = 'internal scratch']
  #allocation2 [shape = 'f32[1,1]{1,0:T(1,128)S(1)}', space=vmem, size = 0x200, scoped, tag = 'scoped memory for tpu_custom_call.1']
  %s0 = inlined_call_operand.vmem [shape: f32[8,32], index: 0, kind: input, shape index: {}]
  %s1 = inlined_call_operand.vmem [shape: bf16[32,16], index: 1, kind: input, shape index: {}]
  %s2 = inlined_call_operand.vmem [shape: f32[1,16], index: 2, kind: input, shape index: {}]
  %s3 = inlined_call_operand.vmem [shape: bf16[16,16], index: 3, kind: input, shape index: {}]
  %s4 = inlined_call_operand.vmem [shape: f32[1,16], index: 4, kind: input, shape index: {}]
  %s5 = inlined_call_operand.vmem [shape: f32[1,16], index: 5, kind: input, shape index: {}]
  %s6 = inlined_call_operand.<no memory space> [shape: f32[1,1], index: 6, kind: input, shape index: {}]
  %s7 = inlined_call_operand.hbm [shape: f32[1,8], index: 7, kind: output, shape index: {}]
  %s8 = sld [smem:[#allocation0]]
  $region38: #{tpu_custom_call.1} parent=0
    _
  %s10 = ssub.s32 1, %s8
  %s11 = scalar_select 0, %s10, %s8
  %v12 = vstv %s6
  %13 = vst [vmem:[#allocation2] sm:$0x1] %v12
  $region1: #{tpu_custom_call.1} parent=0
    #allocation3 [shape = 'u8[512]{0}', space=vmem, size = 0x400, scoped, tag = 'output window, operand 0, single buffered']
    #allocation4 [shape = 's32[1]{0}', space=sflag, size = 0x4, scoped, tag = 'scoped memory for tpu_custom_call.1']
    %14 = vsyncpa [#allocation4], 0
    // Predicated region
    $region2: #{tpu_custom_call.1} parent=1 // pred_check
      _
    $region3: #{tpu_custom_call.1} parent=1 // pred_check_branch
      %16 = sbr.rel (0) target = $region5
    $region4: #{tpu_custom_call.1} parent=1 // pred_region
      _
    $region5: #{tpu_custom_call.1} parent=1 // pred_fallthru
      _
    // Predicated region
    $region6: #{tpu_custom_call.1} parent=1 // pred_check
      _
    $region7: #{tpu_custom_call.1} parent=1 // pred_check_branch
      %18 = sbr.rel (0) target = $region9
    $region8: #{tpu_custom_call.1} parent=1 // pred_region
      _
    $region9: #{tpu_custom_call.1} parent=1 // pred_fallthru
      _
    // Predicated region
    $region10: #{tpu_custom_call.1} parent=1 // pred_check
      _
    $region11: #{tpu_custom_call.1} parent=1 // pred_check_branch
      %20 = sbr.rel (0) target = $region13
    $region12: #{tpu_custom_call.1} parent=1 // pred_region
      _
    $region13: #{tpu_custom_call.1} parent=1 // pred_fallthru
      _
    // Predicated region
    $region14: #{tpu_custom_call.1} parent=1 // pred_check
      _
    $region15: #{tpu_custom_call.1} parent=1 // pred_check_branch
      %22 = sbr.rel (0) target = $region17
    $region16: #{tpu_custom_call.1} parent=1 // pred_region
      _
    $region17: #{tpu_custom_call.1} parent=1 // pred_fallthru
      _
    // Predicated region
    $region18: #{tpu_custom_call.1} parent=1 // pred_check
      _
    $region19: #{tpu_custom_call.1} parent=1 // pred_check_branch
      %24 = sbr.rel (0) target = $region21
    $region20: #{tpu_custom_call.1} parent=1 // pred_region
      _
    $region21: #{tpu_custom_call.1} parent=1 // pred_fallthru
      _
    // Predicated region
    $region22: #{tpu_custom_call.1} parent=1 // pred_check
      _
    $region23: #{tpu_custom_call.1} parent=1 // pred_check_branch
      %26 = sbr.rel (0) target = $region25
    $region24: #{tpu_custom_call.1} parent=1 // pred_region
      _
    $region25: #{tpu_custom_call.1} parent=1 // pred_fallthru
      _
    // Predicated region
    $region26: #{tpu_custom_call.1} parent=1 // pred_check
      _
    $region27: #{tpu_custom_call.1} parent=1 // pred_check_branch
      %28 = sbr.rel (0) target = $region29
    $region28: #{tpu_custom_call.1} parent=1 // pred_region
      _
    $region29: #{tpu_custom_call.1} parent=1 // pred_fallthru
      _
    %v30 = vld [vmem:[%s0] sm:$0xff]
    %v31 = vpack.c.bf16 %v30, %v30
    %v32 = vld [vmem:[%s1] sm:$0xf]
    %v33 = vld [vmem:[%s1 + $0x4] sm:$0xf]
    %v34 = vld [vmem:[%s1 + $0x8] sm:$0xf]
    %v35 = vld [vmem:[%s1 + $0xc] sm:$0xf]
    %v36 = vld [vmem:[%s2] sm:$0x1]
    %v38 = vlaneseq
    %v39 = vshrl.u32 %v38, 7
    %v40 = vsub.s32 0, %v39
    %v41 = vrot.slane %v36, %v40
    %v47 = vunpack.c.l.b16 %v32
    %v48 = vunpack.c.l.b16 %v33
    %v49 = vunpack.c.l.b16 %v34
    %v50 = vunpack.c.l.b16 %v35
    %v51 = vpack.c.b16 %v48, %v47
    %v52 = vpack.c.b16 %v50, %v49
    %vm55 = vcmask 261120
    %v57 = vsel %vm55, %v31, 0
    %59 = vmatprep.subr.bf16.mxu0 0
    %60 = vmatpush1.bf16.msra.mxu0 %v51
    %61 = vmatprep.subr.bf16.mxu0 0
    %62 = vmatpush1.bf16.msra.mxu0 %v52
    %63 = vmatprep.subr.bf16.mxu0 0
    %64 = vmatpush1.bf16.msra.mxu0 0
    %65 = vmatprep.subr.bf16.mxu0 0
    %66 = vmatpush1.bf16.msra.mxu0 0
    %67 = vmatprep.subr.bf16.mxu0 0
    %68 = vmatpush1.bf16.msra.mxu0 0
    %69 = vmatprep.subr.bf16.mxu0 0
    %70 = vmatpush1.bf16.msra.mxu0 0
    %71 = vmatprep.subr.bf16.mxu0 0
    %72 = vmatpush1.bf16.msra.mxu0 0
    %73 = vmatprep.subr.bf16.mxu0 0
    %74 = vmatpush1.bf16.msra.mxu0 0
    %75 = vmatprep.subr.bf16.mxu0 0
    %76 = vmatpush1.bf16.msra.mxu0 0
    %77 = vmatprep.subr.bf16.mxu0 0
    %78 = vmatpush1.bf16.msra.mxu0 0
    %79 = vmatprep.subr.bf16.mxu0 0
    %80 = vmatpush1.bf16.msra.mxu0 0
    %81 = vmatprep.subr.bf16.mxu0 0
    %82 = vmatpush1.bf16.msra.mxu0 0
    %83 = vmatprep.subr.bf16.mxu0 0
    %84 = vmatpush1.bf16.msra.mxu0 0
    %85 = vmatprep.subr.bf16.mxu0 0
    %86 = vmatpush1.bf16.msra.mxu0 0
    %87 = vmatprep.subr.bf16.mxu0 0
    %88 = vmatpush1.bf16.msra.mxu0 0
    %89 = vmatprep.subr.bf16.mxu0 0
    %90 = vmatpush1.bf16.msra.mxu0 0
    %91 = vmatprep.mubr.bf16.mxu0 0
    %92 = vmatmul.mubr.bf16.gmra.mrb[0].mxu0 %v57
    %v93 = vpop.f32.mrb[0].mxu0
    %v94 = vadd.f32 %v41, %v93
    %v95 = vpop.f32.mrb[0].mxu0
    %v96 = vpop.f32.mrb[0].mxu0
    %v97 = vpop.f32.mrb[0].mxu0
    %98 = vdwg.mxu0
    %v99 = vmax.f32 %v94, 0.0
    %v100 = vpack.c.bf16 %v99, %v99
    %v101 = vld [vmem:[%s3] sm:$0xf]
    %v102 = vld [vmem:[%s3 + $0x4] sm:$0xf]
    %v103 = vld [vmem:[%s4] sm:$0x1]
    %v105 = vlaneseq
    %v106 = vshrl.u32 %v105, 7
    %v107 = vsub.s32 0, %v106
    %v108 = vrot.slane %v103, %v107
    %v112 = vunpack.c.l.b16 %v101
    %v113 = vunpack.c.l.b16 %v102
    %v114 = vpack.c.b16 %v113, %v112
    %vm116 = vcmask 130048
    %v118 = vsel %vm116, %v100, 0
    %120 = vmatprep.subr.bf16.mxu0 0
    %121 = vmatpush1.bf16.msra.mxu0 %v114
    %122 = vmatprep.subr.bf16.mxu0 0
    %123 = vmatpush1.bf16.msra.mxu0 0
    %124 = vmatprep.subr.bf16.mxu0 0
    %125 = vmatpush1.bf16.msra.mxu0 0
    %126 = vmatprep.subr.bf16.mxu0 0
    %127 = vmatpush1.bf16.msra.mxu0 0
    %128 = vmatprep.subr.bf16.mxu0 0
    %129 = vmatpush1.bf16.msra.mxu0 0
    %130 = vmatprep.subr.bf16.mxu0 0
    %131 = vmatpush1.bf16.msra.mxu0 0
    %132 = vmatprep.subr.bf16.mxu0 0
    %133 = vmatpush1.bf16.msra.mxu0 0
    %134 = vmatprep.subr.bf16.mxu0 0
    %135 = vmatpush1.bf16.msra.mxu0 0
    %136 = vmatprep.subr.bf16.mxu0 0
    %137 = vmatpush1.bf16.msra.mxu0 0
    %138 = vmatprep.subr.bf16.mxu0 0
    %139 = vmatpush1.bf16.msra.mxu0 0
    %140 = vmatprep.subr.bf16.mxu0 0
    %141 = vmatpush1.bf16.msra.mxu0 0
    %142 = vmatprep.subr.bf16.mxu0 0
    %143 = vmatpush1.bf16.msra.mxu0 0
    %144 = vmatprep.subr.bf16.mxu0 0
    %145 = vmatpush1.bf16.msra.mxu0 0
    %146 = vmatprep.subr.bf16.mxu0 0
    %147 = vmatpush1.bf16.msra.mxu0 0
    %148 = vmatprep.subr.bf16.mxu0 0
    %149 = vmatpush1.bf16.msra.mxu0 0
    %150 = vmatprep.subr.bf16.mxu0 0
    %151 = vmatpush1.bf16.msra.mxu0 0
    %152 = vmatprep.mubr.bf16.mxu0 0
    %153 = vmatmul.mubr.bf16.gmra.mrb[0].mxu0 %v118
    %v154 = vpop.f32.mrb[0].mxu0
    %v155 = vadd.f32 %v108, %v154
    %v156 = vpop.f32.mrb[0].mxu0
    %v157 = vpop.f32.mrb[0].mxu0
    %v158 = vpop.f32.mrb[0].mxu0
    %159 = vdwg.mxu0
    %v160 = vmax.f32 %v155, 0.0
    %v161 = vld [vmem:[%s5] sm:$0x1]
    %v163 = vlaneseq
    %v164 = vshrl.u32 %v163, 7
    %v165 = vsub.s32 0, %v164
    %v166 = vrot.slane %v161, %v165
    %v168 = vmul.f32 %v160, %v166
    %v169 = vsel %vm116, %v168, 0.0
    %170 = vadd.xlane.f32.xlu0 %v169
    %v171 = vpop.xlane.xlu0 %170
    %v172 = vld [vmem:[#allocation2] sm:$0x1]
    %174 = vset.pattern.permute.xlu0 0
    %175 = vperm.xlu0 %174, %v172
    %v176 = vpop.permute.xlu0 %175
    %v178 = vlaneseq
    %v179 = vshrl.u32 %v178, 7
    %v180 = vsub.s32 0, %v179
    %v181 = vrot.slane %v176, %v180
    %v182 = vadd.f32 %v171, %v181
    %v184 = vlaneseq
    %v185 = vand.u32 %v184, 127
    %v186 = vlaneseq
    %v187 = vshrl.u32 %v186, 7
    %v188 = vsub.s32 %v185, %v187
    %v189 = vrot.slane %v182, %v188
    %vm191 = vcmask 57344
    %192 = vst.msk [vmem:[#allocation3] sm:$0x1] %vm191, %v189
    // Predicated region
    $region30: #{tpu_custom_call.1} parent=1 // pred_check
      _
    $region31: #{tpu_custom_call.1} parent=1 // pred_check_branch
      %194 = sbr.rel (0) target = $region33
    $region32: #{tpu_custom_call.1} parent=1 // pred_region
      %s196 = ssub.s32 16, 16
      %197 = vsyncadd [#allocation4], %s196
      %s199 = sshll.u32 [#allocation3], 4
      %s200 = int_to_ptr.vmem [resolvable:$true] %s199
      %202 = dma.vmem_to_hbm [thread:$0]  %s200, 16, %s7, [#allocation4]
    $region33: #{tpu_custom_call.1} parent=1 // pred_fallthru
      _
    // Predicated region
    $region34: #{tpu_custom_call.1} parent=1 // pred_check
      _
    $region35: #{tpu_custom_call.1} parent=1 // pred_check_branch
      %204 = sbr.rel (0) target = $region37
    $region36: #{tpu_custom_call.1} parent=1 // pred_region
      %205 = dma.done [#allocation4], 16
    $region37: #{tpu_custom_call.1} parent=1 // pred_fallthru
      _
    %206 = vsyncpa [#allocation4], 1

</llo_original>
